<compile_context>
chip_gen: v6e
topology: v6e:2x2x1
jax: 0.10.0
libtpu: 0.0.40
codegen_flags: <defaults>
</compile_context>

<pallas_src>
import functools

import jax
import jax.numpy as jnp
from jax.experimental import pallas as pl
from jax.experimental.pallas import tpu as pltpu


def _fused_mlp_kernel(*refs, apply_relu):
    """Fused MLP on one batch tile, batch-major.

    refs = (x_ref, w1_ref, b1_ref, w2_ref, b2_ref, ..., o_ref)
      x_ref : (TILE_B, in_f)
      wi_ref: (in_i, out_i)     -- pre-transposed, used directly as h @ W
      bi_ref: (1, out_i)        -- broadcasts over the batch (sublane) axis
      o_ref : (TILE_B, out_last)
    """
    x_ref, *wb_refs, o_ref = refs
    h = x_ref[...]
    for li, relu in enumerate(apply_relu):
        w = wb_refs[2 * li][...]
        b = wb_refs[2 * li + 1][...]
        h = jnp.dot(h, w, preferred_element_type=jnp.float32) + b
        if relu:
            h = jnp.maximum(h, 0.0)
    o_ref[...] = h.astype(o_ref.dtype)


def _round_up(x, m):
    return -(-x // m) * m


@functools.partial(jax.jit, static_argnames=("use_tail_as_out", "tile_b"))
def mlp_forward(x, params, use_tail_as_out=True, tile_b=8192):
    """Fused MLP forward.

    x      : (B, in_f) float32
    params : list of (W (in_f, out_f), b (1, out_f))  -- pre-transposed layout.
    """
    B, in_f = x.shape
    n_layers = len(params)
    out_f = params[-1][0].shape[1]
    apply_relu = tuple(
        not (i == n_layers - 1 and use_tail_as_out) for i in range(n_layers)
    )

    # --- tile selection ------------------------------------------------
    # Small batch: one full-extent block (always legal).  Larger batches:
    # at least 2 balanced steps (keeps both v7x TensorCores fed), capped at
    # tile_b so the per-step VMEM footprint stays within budget.
    if B <= 256:
        tb = B
    else:
        n_steps = max(2, pl.cdiv(B, tile_b))
        tb = min(tile_b, _round_up(pl.cdiv(B, n_steps), 128))
    grid = (pl.cdiv(B, tb),)

    # --- specs ----------------------------------------------------------
    in_specs = [pl.BlockSpec((tb, in_f), lambda i: (i, 0))]
    flat_args = [x]
    for (w, b) in params:
        inf_, of = w.shape
        # Grid-invariant blocks: stay VMEM-resident, no per-step DMA.
        in_specs.append(pl.BlockSpec((inf_, of), lambda i: (0, 0)))
        in_specs.append(pl.BlockSpec((1, of), lambda i: (0, 0)))
        flat_args += [w, b]
    out_spec = pl.BlockSpec((tb, out_f), lambda i: (i, 0))

    # --- VMEM budget & cost estimate -------------------------------------
    # Worst case each (rows, <=128-wide) f32 block is lane-padded to 128 in
    # VMEM => 512 B/row/buffer.  x and out double-buffered + two hidden
    # activations => ~6 buffers, plus params/slack.
    vmem_need = tb * 512 * 6 + (256 << 10)
    vmem_limit = int(min(max(vmem_need * 3 // 2, 8 << 20), 40 << 20))

    flops = 2 * B * sum(w.shape[0] * w.shape[1] for w, _ in params)
    bytes_accessed = 4 * (B * (in_f + out_f)
                          + sum(w.size + b.size for w, b in params))
    cost = pl.CostEstimate(
        flops=flops, bytes_accessed=bytes_accessed, transcendentals=0
    )

    kernel = functools.partial(_fused_mlp_kernel, apply_relu=apply_relu)

    return pl.pallas_call(
        kernel,
        out_shape=jax.ShapeDtypeStruct((B, out_f), jnp.float32),
        grid=grid,
        in_specs=in_specs,
        out_specs=out_spec,
        compiler_params=pltpu.CompilerParams(
            dimension_semantics=("parallel",),   # megacore sharding on v7x
            vmem_limit_bytes=vmem_limit,
        ),
        cost_estimate=cost,
    )(*flat_args)


def init_mlp_params(key, n_features_list):
    """Deterministic params, pre-transposed: W (in_f, out_f), b (1, out_f)."""
    params = []
    for i in range(len(n_features_list) - 1):
        in_f, out_f = n_features_list[i], n_features_list[i + 1]
        key, kw, kb = jax.random.split(key, 3)
        bound = float(in_f) ** -0.5
        w = jax.random.uniform(kw, (in_f, out_f), jnp.float32, -bound, bound)
        b = jax.random.uniform(kb, (1, out_f), jnp.float32, -bound, bound)
        params.append((w, b))
    return params


def _reference(x, params, use_tail_as_out=True):
    h = x
    n = len(params)
    for i, (w, b) in enumerate(params):
        h = h @ w + b
        if not (i == n - 1 and use_tail_as_out):
            h = jnp.maximum(h, 0.0)
    return h


if __name__ == "__main__":
    key = jax.random.PRNGKey(0)
    n_features_list = [16, 32, 32, 8]

    kx, kx2, kp = jax.random.split(key, 3)
    params = init_mlp_params(kp, n_features_list)

    # Small demo batch (single full-extent block path).
    x = jax.random.normal(kx, (8, n_features_list[0]), dtype=jnp.float32)
    out = jax.block_until_ready(mlp_forward(x, params, use_tail_as_out=True))
    ref = _reference(x, params, use_tail_as_out=True)
    assert out.shape == (8, n_features_list[-1])
    assert jnp.allclose(out, ref, atol=1e-4, rtol=1e-4)

    # Larger batch: two balanced 768-row tiles, second tile partial (no pad,
    # no transpose, masked final writeback).
    x2 = jax.random.normal(kx2, (1500, n_features_list[0]), dtype=jnp.float32)
    out2 = jax.block_until_ready(mlp_forward(x2, params, use_tail_as_out=True))
    ref2 = _reference(x2, params, use_tail_as_out=True)
    assert out2.shape == (1500, n_features_list[-1])
    assert jnp.allclose(out2, ref2, atol=1e-4, rtol=1e-4)

    print("KERNEL_OK")
</pallas_src>

<mosaic_0001>
module attributes {stable_mosaic.version = 11 : i64} {
  func.func @_fused_mlp_kernel(%arg0: i32, %arg1: memref<8x16xf32, #tpu.memory_space<vmem>>, %arg2: memref<16x32xf32, #tpu.memory_space<vmem>>, %arg3: memref<1x32xf32, #tpu.memory_space<vmem>>, %arg4: memref<32x32xf32, #tpu.memory_space<vmem>>, %arg5: memref<1x32xf32, #tpu.memory_space<vmem>>, %arg6: memref<32x8xf32, #tpu.memory_space<vmem>>, %arg7: memref<1x8xf32, #tpu.memory_space<vmem>>, %arg8: memref<8x8xf32, #tpu.memory_space<vmem>>) attributes {dimension_semantics = [#tpu.dimension_semantics<parallel>], iteration_bounds = array<i64: 1>, scalar_prefetch = 0 : i64, scratch_operands = 0 : i64, tpu.core_type = #tpu.core_type<tc>, window_params = [{transform_indices = @transform_0, window_bounds = array<i64: 8, 16>}, {pipeline_mode = #tpu.pipeline_mode<synchronous>, transform_indices = @transform_1, window_bounds = array<i64: 16, 32>}, {pipeline_mode = #tpu.pipeline_mode<synchronous>, transform_indices = @transform_2, window_bounds = array<i64: 1, 32>}, {pipeline_mode = #tpu.pipeline_mode<synchronous>, transform_indices = @transform_3, window_bounds = array<i64: 32, 32>}, {pipeline_mode = #tpu.pipeline_mode<synchronous>, transform_indices = @transform_4, window_bounds = array<i64: 1, 32>}, {pipeline_mode = #tpu.pipeline_mode<synchronous>, transform_indices = @transform_5, window_bounds = array<i64: 32, 8>}, {pipeline_mode = #tpu.pipeline_mode<synchronous>, transform_indices = @transform_6, window_bounds = array<i64: 1, 8>}, {transform_indices = @transform_7, window_bounds = array<i64: 8, 8>}]} {
    %c0 = arith.constant 0 : index
    %c0_0 = arith.constant 0 : index
    %0 = vector.load %arg1[%c0, %c0_0] : memref<8x16xf32, #tpu.memory_space<vmem>>, vector<8x16xf32>
    %c0_1 = arith.constant 0 : index
    %c0_2 = arith.constant 0 : index
    %1 = vector.load %arg2[%c0_1, %c0_2] : memref<16x32xf32, #tpu.memory_space<vmem>>, vector<16x32xf32>
    %c0_3 = arith.constant 0 : index
    %c0_4 = arith.constant 0 : index
    %2 = vector.load %arg3[%c0_3, %c0_4] : memref<1x32xf32, #tpu.memory_space<vmem>>, vector<1x32xf32>
    %cst = arith.constant dense<0.000000e+00> : vector<8x32xf32>
    %3 = tpu.matmul %0, %1, %cst {dimension_numbers = #tpu.dot_dimension_numbers<[1], [0], [0], [1], [0, 0, 1, 1], [], []>} : vector<8x16xf32>, vector<16x32xf32>, vector<8x32xf32> -> vector<8x32xf32>
    %4 = vector.broadcast %2 : vector<1x32xf32> to vector<8x32xf32>
    %5 = arith.addf %3, %4 : vector<8x32xf32>
    %cst_5 = arith.constant 0.000000e+00 : f32
    %6 = vector.broadcast %cst_5 : f32 to vector<8x32xf32>
    %7 = arith.maximumf %5, %6 : vector<8x32xf32>
    %c0_6 = arith.constant 0 : index
    %c0_7 = arith.constant 0 : index
    %8 = vector.load %arg4[%c0_6, %c0_7] : memref<32x32xf32, #tpu.memory_space<vmem>>, vector<32x32xf32>
    %c0_8 = arith.constant 0 : index
    %c0_9 = arith.constant 0 : index
    %9 = vector.load %arg5[%c0_8, %c0_9] : memref<1x32xf32, #tpu.memory_space<vmem>>, vector<1x32xf32>
    %cst_10 = arith.constant dense<0.000000e+00> : vector<8x32xf32>
    %10 = tpu.matmul %7, %8, %cst_10 {dimension_numbers = #tpu.dot_dimension_numbers<[1], [0], [0], [1], [0, 0, 1, 1], [], []>} : vector<8x32xf32>, vector<32x32xf32>, vector<8x32xf32> -> vector<8x32xf32>
    %11 = vector.broadcast %9 : vector<1x32xf32> to vector<8x32xf32>
    %12 = arith.addf %10, %11 : vector<8x32xf32>
    %cst_11 = arith.constant 0.000000e+00 : f32
    %13 = vector.broadcast %cst_11 : f32 to vector<8x32xf32>
    %14 = arith.maximumf %12, %13 : vector<8x32xf32>
    %c0_12 = arith.constant 0 : index
    %c0_13 = arith.constant 0 : index
    %15 = vector.load %arg6[%c0_12, %c0_13] : memref<32x8xf32, #tpu.memory_space<vmem>>, vector<32x8xf32>
    %c0_14 = arith.constant 0 : index
    %c0_15 = arith.constant 0 : index
    %16 = vector.load %arg7[%c0_14, %c0_15] : memref<1x8xf32, #tpu.memory_space<vmem>>, vector<1x8xf32>
    %cst_16 = arith.constant dense<0.000000e+00> : vector<8x8xf32>
    %17 = tpu.matmul %14, %15, %cst_16 {dimension_numbers = #tpu.dot_dimension_numbers<[1], [0], [0], [1], [0, 0, 1, 1], [], []>} : vector<8x32xf32>, vector<32x8xf32>, vector<8x8xf32> -> vector<8x8xf32>
    %18 = vector.broadcast %16 : vector<1x8xf32> to vector<8x8xf32>
    %19 = arith.addf %17, %18 : vector<8x8xf32>
    %c0_17 = arith.constant 0 : index
    %c0_18 = arith.constant 0 : index
    %20 = vector.load %arg8[%c0_17, %c0_18] : memref<8x8xf32, #tpu.memory_space<vmem>>, vector<8x8xf32>
    tpu.vector_store %arg8[%c0_17, %c0_18], %19 {strides = array<i32>} : memref<8x8xf32, #tpu.memory_space<vmem>>, vector<8x8xf32>,
    return
  }
  func.func @transform_0(%arg0: i32) -> (i32, i32) {
    %c0_i32 = arith.constant 0 : i32
    %c0_i32_0 = arith.constant 0 : i32
    return %arg0, %c0_i32 : i32, i32
  }
  func.func @transform_1(%arg0: i32) -> (i32, i32) {
    %c0_i32 = arith.constant 0 : i32
    %c0_i32_0 = arith.constant 0 : i32
    %c0_i32_1 = arith.constant 0 : i32
    return %c0_i32, %c0_i32_0 : i32, i32
  }
  func.func @transform_2(%arg0: i32) -> (i32, i32) {
    %c0_i32 = arith.constant 0 : i32
    %c0_i32_0 = arith.constant 0 : i32
    %c0_i32_1 = arith.constant 0 : i32
    return %c0_i32, %c0_i32_0 : i32, i32
  }
  func.func @transform_3(%arg0: i32) -> (i32, i32) {
    %c0_i32 = arith.constant 0 : i32
    %c0_i32_0 = arith.constant 0 : i32
    %c0_i32_1 = arith.constant 0 : i32
    return %c0_i32, %c0_i32_0 : i32, i32
  }
  func.func @transform_4(%arg0: i32) -> (i32, i32) {
    %c0_i32 = arith.constant 0 : i32
    %c0_i32_0 = arith.constant 0 : i32
    %c0_i32_1 = arith.constant 0 : i32
    return %c0_i32, %c0_i32_0 : i32, i32
  }
  func.func @transform_5(%arg0: i32) -> (i32, i32) {
    %c0_i32 = arith.constant 0 : i32
    %c0_i32_0 = arith.constant 0 : i32
    %c0_i32_1 = arith.constant 0 : i32
    return %c0_i32, %c0_i32_0 : i32, i32
  }
  func.func @transform_6(%arg0: i32) -> (i32, i32) {
    %c0_i32 = arith.constant 0 : i32
    %c0_i32_0 = arith.constant 0 : i32
    %c0_i32_1 = arith.constant 0 : i32
    return %c0_i32, %c0_i32_0 : i32, i32
  }
  func.func @transform_7(%arg0: i32) -> (i32, i32) {
    %c0_i32 = arith.constant 0 : i32
    %c0_i32_0 = arith.constant 0 : i32
    return %arg0, %c0_i32 : i32, i32
  }
}

</mosaic_0001>

<llo_original>
// kernel: mlp_forward.1
$region0: #{mlp_forward.1}
  #allocation0 [shape = 'u32[]', space=smem, size = 0x4, offset = 0x4, fixed_abs, tag = 'smem constant byte address 0x4 - core index']
  #allocation1 [shape = 'u32[144,128]{1,0:T(1,128)}', space=vmem, size = 0x12000, scoped, tag = 'internal scratch']
  %s0 = inlined_call_operand.vmem [shape: f32[8,16], index: 0, kind: input, shape index: {}]
  %s1 = inlined_call_operand.hbm [shape: f32[16,32], index: 1, kind: input, shape index: {}]
  %s2 = inlined_call_operand.vmem [shape: f32[1,32], index: 2, kind: input, shape index: {}]
  %s3 = inlined_call_operand.vmem [shape: f32[32,32], index: 3, kind: input, shape index: {}]
  %s4 = inlined_call_operand.hbm [shape: f32[1,32], index: 4, kind: input, shape index: {}]
  %s5 = inlined_call_operand.vmem [shape: f32[32,8], index: 5, kind: input, shape index: {}]
  %s6 = inlined_call_operand.vmem [shape: f32[1,8], index: 6, kind: input, shape index: {}]
  %s7 = inlined_call_operand.hbm [shape: f32[8,8], index: 7, kind: output, shape index: {}]
  %s8 = sld [smem:[#allocation0]]
  $region46: #{mlp_forward.1} parent=0
    _
  %s10 = ssub.s32 1, %s8
  %s11 = scalar_select 0, %s10, %s8
  $region1: #{mlp_forward.1} parent=0
    #allocation2 [shape = 'u8[8192]{0}', space=vmem, size = 0x2000, scoped, tag = 'input window, operand 1, single buffered']
    #allocation3 [shape = 's32[1]{0}', space=sflag, size = 0x4, scoped, tag = 'scoped memory for mlp_forward.1']
    #allocation4 [shape = 's32[1]{0}', space=sflag, size = 0x4, scoped, tag = 'scoped memory for mlp_forward.1']
    #allocation5 [shape = 'u8[512]{0}', space=vmem, size = 0x400, scoped, tag = 'input window, operand 4, single buffered']
    #allocation6 [shape = 's32[1]{0}', space=sflag, size = 0x4, scoped, tag = 'scoped memory for mlp_forward.1']
    #allocation7 [shape = 'u8[4096]{0}', space=vmem, size = 0x1000, scoped, tag = 'output window, operand 0, single buffered']
    %12 = vsyncpa [#allocation3], 0
    %13 = vsyncpa [#allocation6], 0
    %14 = vsyncpa [#allocation4], 0
    // Predicated region
    $region2: #{mlp_forward.1} parent=1 // pred_check
      _
    $region3: #{mlp_forward.1} parent=1 // pred_check_branch
      %16 = sbr.rel (0) target = $region5
    $region4: #{mlp_forward.1} parent=1 // pred_region
      _
    $region5: #{mlp_forward.1} parent=1 // pred_fallthru
      _
    // Predicated region
    $region6: #{mlp_forward.1} parent=1 // pred_check
      _
    $region7: #{mlp_forward.1} parent=1 // pred_check_branch
      %18 = sbr.rel (0) target = $region9
    $region8: #{mlp_forward.1} parent=1 // pred_region
      %s20 = ssub.s32 256, 256
      %21 = vsyncadd [#allocation3], %s20
      %s22 = sshll.u32 [#allocation2], 4
      %s23 = int_to_ptr.vmem [resolvable:$true] %s22
      %28 = dma.hbm_to_vmem [thread:$0]  %s1, 256, %s23, [#allocation3], 128, 128, 8
    $region9: #{mlp_forward.1} parent=1 // pred_fallthru
      _
    // Predicated region
    $region10: #{mlp_forward.1} parent=1 // pred_check
      _
    $region11: #{mlp_forward.1} parent=1 // pred_check_branch
      %30 = sbr.rel (0) target = $region13
    $region12: #{mlp_forward.1} parent=1 // pred_region
      _
    $region13: #{mlp_forward.1} parent=1 // pred_fallthru
      _
    // Predicated region
    $region14: #{mlp_forward.1} parent=1 // pred_check
      _
    $region15: #{mlp_forward.1} parent=1 // pred_check_branch
      %32 = sbr.rel (0) target = $region17
    $region16: #{mlp_forward.1} parent=1 // pred_region
      _
    $region17: #{mlp_forward.1} parent=1 // pred_fallthru
      _
    // Predicated region
    $region18: #{mlp_forward.1} parent=1 // pred_check
      _
    $region19: #{mlp_forward.1} parent=1 // pred_check_branch
      %34 = sbr.rel (0) target = $region21
    $region20: #{mlp_forward.1} parent=1 // pred_region
      %s36 = ssub.s32 16, 16
      %37 = vsyncadd [#allocation6], %s36
      %s39 = sshll.u32 [#allocation5], 4
      %s40 = int_to_ptr.vmem [resolvable:$true] %s39
      %42 = dma.hbm_to_vmem [thread:$0]  %s4, 16, %s40, [#allocation6]
    $region21: #{mlp_forward.1} parent=1 // pred_fallthru
      _
    // Predicated region
    $region22: #{mlp_forward.1} parent=1 // pred_check
      _
    $region23: #{mlp_forward.1} parent=1 // pred_check_branch
      %44 = sbr.rel (0) target = $region25
    $region24: #{mlp_forward.1} parent=1 // pred_region
      _
    $region25: #{mlp_forward.1} parent=1 // pred_fallthru
      _
    // Predicated region
    $region26: #{mlp_forward.1} parent=1 // pred_check
      _
    $region27: #{mlp_forward.1} parent=1 // pred_check_branch
      %46 = sbr.rel (0) target = $region29
    $region28: #{mlp_forward.1} parent=1 // pred_region
      _
    $region29: #{mlp_forward.1} parent=1 // pred_fallthru
      _
    // Predicated region
    $region30: #{mlp_forward.1} parent=1 // pred_check
      _
    $region31: #{mlp_forward.1} parent=1 // pred_check_branch
      %48 = sbr.rel (0) target = $region33
    $region32: #{mlp_forward.1} parent=1 // pred_region
      %49 = dma.done [#allocation3], 256
    $region33: #{mlp_forward.1} parent=1 // pred_fallthru
      _
    // Predicated region
    $region34: #{mlp_forward.1} parent=1 // pred_check
      _
    $region35: #{mlp_forward.1} parent=1 // pred_check_branch
      %51 = sbr.rel (0) target = $region37
    $region36: #{mlp_forward.1} parent=1 // pred_region
      %52 = dma.done [#allocation6], 16
    $region37: #{mlp_forward.1} parent=1 // pred_fallthru
      _
    %v53 = vld [vmem:[%s0] sm:$0xff]
    %v54 = vld [vmem:[#allocation2] sm:$0xff]
    %v55 = vld [vmem:[#allocation2 + $0x8] sm:$0xff]
    %v56 = vld [vmem:[%s2] sm:$0x1]
    %v58 = vlaneseq
    %v59 = vshrl.u32 %v58, 7
    %v60 = vsub.s32 0, %v59
    %v61 = vrot.slane %v56, %v60
    %vm63 = vcmask 130048
    %v65 = vsel %vm63, %v53, 0
    %67 = vmatprep.subr.mxu0 0.0
    %68 = vmatpush1.msra.mxu0 0.0
    %69 = vmatprep.subr.mxu0 0.0
    %70 = vmatpush1.msra.mxu0 0.0
    %71 = vmatprep.subr.mxu0 0.0
    %72 = vmatpush1.msra.mxu0 0.0
    %73 = vmatprep.subr.mxu0 0.0
    %74 = vmatpush1.msra.mxu0 0.0
    %75 = vmatprep.subr.mxu0 0.0
    %76 = vmatpush1.msra.mxu0 0.0
    %77 = vmatprep.subr.mxu0 0.0
    %78 = vmatpush1.msra.mxu0 0.0
    %79 = vmatprep.subr.mxu0 0.0
    %80 = vmatpush1.msra.mxu0 0.0
    %81 = vmatprep.subr.mxu0 0.0
    %82 = vmatpush1.msra.mxu0 0.0
    %83 = vmatprep.subr.mxu0 0.0
    %84 = vmatpush1.msra.mxu0 0.0
    %85 = vmatprep.subr.mxu0 0.0
    %86 = vmatpush1.msra.mxu0 0.0
    %87 = vmatprep.subr.mxu0 0.0
    %88 = vmatpush1.msra.mxu0 0.0
    %89 = vmatprep.subr.mxu0 0.0
    %90 = vmatpush1.msra.mxu0 0.0
    %91 = vmatprep.subr.mxu0 0.0
    %92 = vmatpush1.msra.mxu0 0.0
    %93 = vmatprep.subr.mxu0 0.0
    %94 = vmatpush1.msra.mxu0 0.0
    %95 = vmatprep.subr.mxu0 0.0
    %96 = vmatpush1.msra.mxu0 %v55
    %97 = vmatprep.subr.mxu0 0.0
    %98 = vmatpush1.msra.mxu0 %v54
    %99 = vmatprep.subr.mxu0 0.0
    %100 = vmatpush2.msra.mxu0 0.0
    %101 = vmatprep.subr.mxu0 0.0
    %102 = vmatpush2.msra.mxu0 0.0
    %103 = vmatprep.subr.mxu0 0.0
    %104 = vmatpush2.msra.mxu0 0.0
    %105 = vmatprep.subr.mxu0 0.0
    %106 = vmatpush2.msra.mxu0 0.0
    %107 = vmatprep.subr.mxu0 0.0
    %108 = vmatpush2.msra.mxu0 0.0
    %109 = vmatprep.subr.mxu0 0.0
    %110 = vmatpush2.msra.mxu0 0.0
    %111 = vmatprep.subr.mxu0 0.0
    %112 = vmatpush2.msra.mxu0 0.0
    %113 = vmatprep.subr.mxu0 0.0
    %114 = vmatpush2.msra.mxu0 0.0
    %115 = vmatprep.subr.mxu0 0.0
    %116 = vmatpush2.msra.mxu0 0.0
    %117 = vmatprep.subr.mxu0 0.0
    %118 = vmatpush2.msra.mxu0 0.0
    %119 = vmatprep.subr.mxu0 0.0
    %120 = vmatpush2.msra.mxu0 0.0
    %121 = vmatprep.subr.mxu0 0.0
    %122 = vmatpush2.msra.mxu0 0.0
    %123 = vmatprep.subr.mxu0 0.0
    %124 = vmatpush2.msra.mxu0 0.0
    %125 = vmatprep.subr.mxu0 0.0
    %126 = vmatpush2.msra.mxu0 0.0
    %127 = vmatprep.subr.mxu0 0.0
    %128 = vmatpush2.msra.mxu0 0.0
    %129 = vmatprep.subr.mxu0 0.0
    %130 = vmatpush2.msra.mxu0 0.0
    %131 = vmatprep.mubr.f32.mxu0 0.0
    %132 = vmatmul.mubr.f32.gmra.mxu0 %v65
    %v133 = vpop.f32.mrf.mxu0
    %v134 = vadd.f32 %v61, %v133
    %v135 = vpop.f32.mrf.mxu0
    %136 = vdwg.mxu0
    %v137 = vmax.f32 %v134, 0.0
    %v138 = vld [vmem:[%s3] sm:$0xff]
    %v139 = vld [vmem:[%s3 + $0x8] sm:$0xff]
    %v140 = vld [vmem:[%s3 + $0x10] sm:$0xff]
    %v141 = vld [vmem:[%s3 + $0x18] sm:$0xff]
    %v142 = vld [vmem:[#allocation5] sm:$0x1]
    %v144 = vlaneseq
    %v145 = vshrl.u32 %v144, 7
    %v146 = vsub.s32 0, %v145
    %v147 = vrot.slane %v142, %v146
    %vm149 = vcmask 261120
    %v151 = vsel %vm149, %v137, 0
    %153 = vmatprep.subr.mxu0 0.0
    %154 = vmatpush1.msra.mxu0 0.0
    %155 = vmatprep.subr.mxu0 0.0
    %156 = vmatpush1.msra.mxu0 0.0
    %157 = vmatprep.subr.mxu0 0.0
    %158 = vmatpush1.msra.mxu0 0.0
    %159 = vmatprep.subr.mxu0 0.0
    %160 = vmatpush1.msra.mxu0 0.0
    %161 = vmatprep.subr.mxu0 0.0
    %162 = vmatpush1.msra.mxu0 0.0
    %163 = vmatprep.subr.mxu0 0.0
    %164 = vmatpush1.msra.mxu0 0.0
    %165 = vmatprep.subr.mxu0 0.0
    %166 = vmatpush1.msra.mxu0 0.0
    %167 = vmatprep.subr.mxu0 0.0
    %168 = vmatpush1.msra.mxu0 0.0
    %169 = vmatprep.subr.mxu0 0.0
    %170 = vmatpush1.msra.mxu0 0.0
    %171 = vmatprep.subr.mxu0 0.0
    %172 = vmatpush1.msra.mxu0 0.0
    %173 = vmatprep.subr.mxu0 0.0
    %174 = vmatpush1.msra.mxu0 0.0
    %175 = vmatprep.subr.mxu0 0.0
    %176 = vmatpush1.msra.mxu0 0.0
    %177 = vmatprep.subr.mxu0 0.0
    %178 = vmatpush1.msra.mxu0 %v141
    %179 = vmatprep.subr.mxu0 0.0
    %180 = vmatpush1.msra.mxu0 %v140
    %181 = vmatprep.subr.mxu0 0.0
    %182 = vmatpush1.msra.mxu0 %v139
    %183 = vmatprep.subr.mxu0 0.0
    %184 = vmatpush1.msra.mxu0 %v138
    %185 = vmatprep.subr.mxu0 0.0
    %186 = vmatpush2.msra.mxu0 0.0
    %187 = vmatprep.subr.mxu0 0.0
    %188 = vmatpush2.msra.mxu0 0.0
    %189 = vmatprep.subr.mxu0 0.0
    %190 = vmatpush2.msra.mxu0 0.0
    %191 = vmatprep.subr.mxu0 0.0
    %192 = vmatpush2.msra.mxu0 0.0
    %193 = vmatprep.subr.mxu0 0.0
    %194 = vmatpush2.msra.mxu0 0.0
    %195 = vmatprep.subr.mxu0 0.0
    %196 = vmatpush2.msra.mxu0 0.0
    %197 = vmatprep.subr.mxu0 0.0
    %198 = vmatpush2.msra.mxu0 0.0
    %199 = vmatprep.subr.mxu0 0.0
    %200 = vmatpush2.msra.mxu0 0.0
    %201 = vmatprep.subr.mxu0 0.0
    %202 = vmatpush2.msra.mxu0 0.0
    %203 = vmatprep.subr.mxu0 0.0
    %204 = vmatpush2.msra.mxu0 0.0
    %205 = vmatprep.subr.mxu0 0.0
    %206 = vmatpush2.msra.mxu0 0.0
    %207 = vmatprep.subr.mxu0 0.0
    %208 = vmatpush2.msra.mxu0 0.0
    %209 = vmatprep.subr.mxu0 0.0
    %210 = vmatpush2.msra.mxu0 0.0
    %211 = vmatprep.subr.mxu0 0.0
    %212 = vmatpush2.msra.mxu0 0.0
    %213 = vmatprep.subr.mxu0 0.0
    %214 = vmatpush2.msra.mxu0 0.0
    %215 = vmatprep.subr.mxu0 0.0
    %216 = vmatpush2.msra.mxu0 0.0
    %217 = vmatprep.mubr.f32.mxu0 0.0
    %218 = vmatmul.mubr.f32.gmra.mxu0 %v151
    %v219 = vpop.f32.mrf.mxu0
    %v220 = vadd.f32 %v147, %v219
    %v221 = vpop.f32.mrf.mxu0
    %222 = vdwg.mxu0
    %v223 = vmax.f32 %v220, 0.0
    %v224 = vld [vmem:[%s5] sm:$0xff]
    %v225 = vld [vmem:[%s5 + $0x8] sm:$0xff]
    %v226 = vld [vmem:[%s5 + $0x10] sm:$0xff]
    %v227 = vld [vmem:[%s5 + $0x18] sm:$0xff]
    %v228 = vld [vmem:[%s6] sm:$0x1]
    %v230 = vlaneseq
    %v231 = vshrl.u32 %v230, 7
    %v232 = vsub.s32 0, %v231
    %v233 = vrot.slane %v228, %v232
    %v236 = vsel %vm149, %v223, 0
    %238 = vmatprep.subr.mxu0 0.0
    %239 = vmatpush1.msra.mxu0 0.0
    %240 = vmatprep.subr.mxu0 0.0
    %241 = vmatpush1.msra.mxu0 0.0
    %242 = vmatprep.subr.mxu0 0.0
    %243 = vmatpush1.msra.mxu0 0.0
    %244 = vmatprep.subr.mxu0 0.0
    %245 = vmatpush1.msra.mxu0 0.0
    %246 = vmatprep.subr.mxu0 0.0
    %247 = vmatpush1.msra.mxu0 0.0
    %248 = vmatprep.subr.mxu0 0.0
    %249 = vmatpush1.msra.mxu0 0.0
    %250 = vmatprep.subr.mxu0 0.0
    %251 = vmatpush1.msra.mxu0 0.0
    %252 = vmatprep.subr.mxu0 0.0
    %253 = vmatpush1.msra.mxu0 0.0
    %254 = vmatprep.subr.mxu0 0.0
    %255 = vmatpush1.msra.mxu0 0.0
    %256 = vmatprep.subr.mxu0 0.0
    %257 = vmatpush1.msra.mxu0 0.0
    %258 = vmatprep.subr.mxu0 0.0
    %259 = vmatpush1.msra.mxu0 0.0
    %260 = vmatprep.subr.mxu0 0.0
    %261 = vmatpush1.msra.mxu0 0.0
    %262 = vmatprep.subr.mxu0 0.0
    %263 = vmatpush1.msra.mxu0 %v227
    %264 = vmatprep.subr.mxu0 0.0
    %265 = vmatpush1.msra.mxu0 %v226
    %266 = vmatprep.subr.mxu0 0.0
    %267 = vmatpush1.msra.mxu0 %v225
    %268 = vmatprep.subr.mxu0 0.0
    %269 = vmatpush1.msra.mxu0 %v224
    %270 = vmatprep.subr.mxu0 0.0
    %271 = vmatpush2.msra.mxu0 0.0
    %272 = vmatprep.subr.mxu0 0.0
    %273 = vmatpush2.msra.mxu0 0.0
    %274 = vmatprep.subr.mxu0 0.0
    %275 = vmatpush2.msra.mxu0 0.0
    %276 = vmatprep.subr.mxu0 0.0
    %277 = vmatpush2.msra.mxu0 0.0
    %278 = vmatprep.subr.mxu0 0.0
    %279 = vmatpush2.msra.mxu0 0.0
    %280 = vmatprep.subr.mxu0 0.0
    %281 = vmatpush2.msra.mxu0 0.0
    %282 = vmatprep.subr.mxu0 0.0
    %283 = vmatpush2.msra.mxu0 0.0
    %284 = vmatprep.subr.mxu0 0.0
    %285 = vmatpush2.msra.mxu0 0.0
    %286 = vmatprep.subr.mxu0 0.0
    %287 = vmatpush2.msra.mxu0 0.0
    %288 = vmatprep.subr.mxu0 0.0
    %289 = vmatpush2.msra.mxu0 0.0
    %290 = vmatprep.subr.mxu0 0.0
    %291 = vmatpush2.msra.mxu0 0.0
    %292 = vmatprep.subr.mxu0 0.0
    %293 = vmatpush2.msra.mxu0 0.0
    %294 = vmatprep.subr.mxu0 0.0
    %295 = vmatpush2.msra.mxu0 0.0
    %296 = vmatprep.subr.mxu0 0.0
    %297 = vmatpush2.msra.mxu0 0.0
    %298 = vmatprep.subr.mxu0 0.0
    %299 = vmatpush2.msra.mxu0 0.0
    %300 = vmatprep.subr.mxu0 0.0
    %301 = vmatpush2.msra.mxu0 0.0
    %302 = vmatprep.mubr.f32.mxu0 0.0
    %303 = vmatmul.mubr.f32.gmra.mxu0 %v236
    %v304 = vpop.f32.mrf.mxu0
    %v305 = vadd.f32 %v233, %v304
    %v306 = vpop.f32.mrf.mxu0
    %307 = vdwg.mxu0
    %vm308 = vcmask 64512
    %309 = vst.msk [vmem:[#allocation7] sm:$0xff] %vm308, %v305
    // Predicated region
    $region38: #{mlp_forward.1} parent=1 // pred_check
      _
    $region39: #{mlp_forward.1} parent=1 // pred_check_branch
      %311 = sbr.rel (0) target = $region41
    $region40: #{mlp_forward.1} parent=1 // pred_region
      %s313 = ssub.s32 128, 128
      %314 = vsyncadd [#allocation4], %s313
      %s316 = sshll.u32 [#allocation7], 4
      %s317 = int_to_ptr.vmem [resolvable:$true] %s316
      %319 = dma.vmem_to_hbm [thread:$0]  %s317, 128, %s7, [#allocation4]
    $region41: #{mlp_forward.1} parent=1 // pred_fallthru
      _
    // Predicated region
    $region42: #{mlp_forward.1} parent=1 // pred_check
      _
    $region43: #{mlp_forward.1} parent=1 // pred_check_branch
      %321 = sbr.rel (0) target = $region45
    $region44: #{mlp_forward.1} parent=1 // pred_region
      %322 = dma.done [#allocation4], 128
    $region45: #{mlp_forward.1} parent=1 // pred_fallthru
      _
    %323 = vsyncpa [#allocation3], 1
    %324 = vsyncpa [#allocation6], 1
    %325 = vsyncpa [#allocation4], 1

</llo_original>
